<compile_context>
chip_gen: v6e
topology: v6e:2x2x1
jax: 0.10.0
libtpu: 0.0.40
codegen_flags: <defaults>
</compile_context>

<pallas_src>
import functools

import numpy as np
import jax
import jax.numpy as jnp
from jax.experimental import pallas as pl
from jax.experimental.pallas import tpu as pltpu


# ----------------------------------------------------------------------------
# Deterministic constellation construction (numpy port of the torch __init__).
# ----------------------------------------------------------------------------
def pam_gray(b):
    if len(b) > 1:
        return (1 - 2 * b[0]) * (2 ** len(b[1:]) - pam_gray(b[1:]))
    return 1 - 2 * b[0]


def qam(n_bits_per_sym, normalize=True):
    assert n_bits_per_sym % 2 == 0 and n_bits_per_sym > 0
    c = np.zeros([2 ** n_bits_per_sym], dtype=np.complex64)
    for i in range(2 ** n_bits_per_sym):
        b = np.array(list(np.binary_repr(i, n_bits_per_sym)), dtype=np.int16)
        c[i] = pam_gray(b[0::2]) + 1j * pam_gray(b[1::2])
    if normalize:
        n = int(n_bits_per_sym / 2)
        qam_var = 1 / 2 ** (n - 2) * np.sum(
            np.linspace(1, 2 ** n - 1, 2 ** (n - 1)) ** 2)
        c /= np.sqrt(qam_var)
    return c


def make_points(n_bits_per_symbol, normalize=True):
    """Replicates QamConstell.__init__: (2, M) float32, row0=real, row1=imag."""
    pts = qam(int(n_bits_per_symbol), normalize=normalize)
    return np.stack([np.real(pts), np.imag(pts)], axis=0).astype(np.float32)


# ----------------------------------------------------------------------------
# Pallas kernel: energy = sum(re^2 + im^2) / M over the true M points
# (zero padding contributes nothing to the sum); scale by rsqrt(energy).
# ----------------------------------------------------------------------------
def qam_normalize_kernel(pts_ref, out_ref, *, inv_m):
    pts = pts_ref[...]                              # (2, M_pad) f32 in VMEM
    energy = jnp.sum(pts * pts) * inv_m             # mean(|x|^2) over true M
    out_ref[...] = pts * jax.lax.rsqrt(energy)      # exact rsqrt (EUP)


def qam_constell_forward(points_2xM, normalize=True, use_pallas=True):
    """JAX equivalent of QamConstell.forward.

    points_2xM: (2, M) float32 array (real row, imag row).
    Returns: (M,) complex64 constellation.
    """
    pts_np = np.asarray(points_2xM, dtype=np.float32)
    m = pts_np.shape[1]

    if not normalize:
        p = jnp.asarray(pts_np)
        return jax.lax.complex(p[0], p[1])

    if not use_pallas:
        # Recommended path for tiny static constellations: let XLA fuse
        # energy / rsqrt / scale / complex-pack into one fusion.
        p = jnp.asarray(pts_np)
        energy = jnp.sum(p * p) * jnp.float32(1.0 / m)
        scaled = p * jax.lax.rsqrt(energy)
        return jax.lax.complex(scaled[0], scaled[1])

    # --- Pallas path -------------------------------------------------------
    # Lane-dense padding done once, in numpy, at construction/trace time.
    m_pad = max(128, ((m + 127) // 128) * 128)
    padded = np.zeros((2, m_pad), dtype=np.float32)
    padded[:, :m] = pts_np

    kernel = functools.partial(qam_normalize_kernel, inv_m=np.float32(1.0 / m))

    scaled = pl.pallas_call(
        kernel,
        out_shape=jax.ShapeDtypeStruct((2, m_pad), jnp.float32),
        # Single gridless block, whole array resident in VMEM: no block_shape,
        # no index_map, no pipelining machinery for a one-shot 1 KiB tile.
        in_specs=[pl.BlockSpec(memory_space=pltpu.MemorySpace.VMEM)],
        out_specs=pl.BlockSpec(memory_space=pltpu.MemorySpace.VMEM),
    )(jnp.asarray(padded))

    # TODO(synk): complex64 has no Pallas TPU dtype; pack outside the kernel.
    return jax.lax.complex(scaled[0, :m], scaled[1, :m])


# ----------------------------------------------------------------------------
# Pure-numpy reference for validation (mirrors the torch forward).
# ----------------------------------------------------------------------------
def reference_forward(points_2xM, normalize=True):
    x = points_2xM[0] + 1j * points_2xM[1]
    if normalize:
        energy = np.mean(np.abs(x) ** 2)
        x = x / np.sqrt(energy)
    return x.astype(np.complex64)


if __name__ == "__main__":
    # Constellation is fully determined by n_bits_per_symbol; key included per
    # harness convention, not used to randomize parameters.
    _ = jax.random.PRNGKey(0)

    n_bits_per_symbol = 4          # M = 16 constellation points
    normalize = True

    points = make_points(n_bits_per_symbol, normalize=normalize)   # (2, 16) f32
    ref = reference_forward(points, normalize=normalize)

    # Pallas kernel path.
    out = qam_constell_forward(points, normalize=normalize, use_pallas=True)
    out = jax.block_until_ready(out)
    np.testing.assert_allclose(np.asarray(out), ref, rtol=1e-5, atol=1e-6)

    # Fused plain-jnp path (the recommended one at this size) — same result.
    out2 = qam_constell_forward(points, normalize=normalize, use_pallas=False)
    out2 = jax.block_until_ready(out2)
    np.testing.assert_allclose(np.asarray(out2), ref, rtol=1e-5, atol=1e-6)

    print("KERNEL_OK")
</pallas_src>

<mosaic_0001>
module attributes {stable_mosaic.version = 11 : i64} {
  func.func @qam_normalize_kernel(%arg0: memref<2x128xf32, #tpu.memory_space<vmem>>, %arg1: memref<2x128xf32, #tpu.memory_space<vmem>>) attributes {dimension_semantics = [], scalar_prefetch = 0 : i64, scratch_operands = 0 : i64, tpu.core_type = #tpu.core_type<tc>} {
    %c0 = arith.constant 0 : index
    %c0_0 = arith.constant 0 : index
    %0 = vector.load %arg0[%c0, %c0_0] : memref<2x128xf32, #tpu.memory_space<vmem>>, vector<2x128xf32>
    %1 = arith.mulf %0, %0 : vector<2x128xf32>
    %2 = vector.shape_cast %1 : vector<2x128xf32> to vector<1x2x128xf32>
    %cst = arith.constant dense<0.000000e+00> : vector<1xf32>
    %3 = vector.multi_reduction <add>, %2, %cst [1, 2] : vector<1x2x128xf32> to vector<1xf32>
    %4 = vector.shape_cast %3 : vector<1xf32> to vector<1x1x1xf32>
    %5 = vector.extract %4[0, 0, 0] : f32 from vector<1x1x1xf32>
    %cst_1 = arith.constant 6.250000e-02 : f32
    %6 = arith.mulf %5, %cst_1 : f32
    %7 = math.rsqrt %6 : f32
    %8 = vector.broadcast %7 : f32 to vector<2x128xf32>
    %9 = arith.mulf %0, %8 : vector<2x128xf32>
    %c0_2 = arith.constant 0 : index
    %c0_3 = arith.constant 0 : index
    %10 = vector.load %arg1[%c0_2, %c0_3] : memref<2x128xf32, #tpu.memory_space<vmem>>, vector<2x128xf32>
    tpu.vector_store %arg1[%c0_2, %c0_3], %9 {strides = array<i32>} : memref<2x128xf32, #tpu.memory_space<vmem>>, vector<2x128xf32>,
    return
  }
}

</mosaic_0001>

<llo_original>
// kernel: tpu_custom_call.1
$region0: #{tpu_custom_call.1}
  #allocation0 [shape = 'u32[]', space=smem, size = 0x4, offset = 0x4, fixed_abs, tag = 'smem constant byte address 0x4 - core index']
  #allocation1 [shape = 'u32[144,128]{1,0:T(1,128)}', space=vmem, size = 0x12000, scoped, tag = 'internal scratch']
  %s0 = inlined_call_operand.hbm [shape: f32[2,128], index: 0, kind: input, shape index: {}]
  %s1 = inlined_call_operand.hbm [shape: f32[2,128], index: 1, kind: output, shape index: {}]
  %s2 = sld [smem:[#allocation0]]
  $region18: #{tpu_custom_call.1} parent=0
    _
  %s4 = ssub.s32 1, %s2
  %s5 = scalar_select 0, %s4, %s2
  $region1: #{tpu_custom_call.1} parent=0
    #allocation2 [shape = 'u8[1024]{0}', space=vmem, size = 0x400, scoped, tag = 'input window, operand 0, single buffered']
    #allocation3 [shape = 's32[1]{0}', space=sflag, size = 0x4, scoped, tag = 'scoped memory for tpu_custom_call.1']
    #allocation4 [shape = 's32[1]{0}', space=sflag, size = 0x4, scoped, tag = 'scoped memory for tpu_custom_call.1']
    #allocation5 [shape = 'u8[1024]{0}', space=vmem, size = 0x400, scoped, tag = 'output window, operand 0, single buffered']
    %6 = vsyncpa [#allocation3], 0
    %7 = vsyncpa [#allocation4], 0
    // Predicated region
    $region2: #{tpu_custom_call.1} parent=1 // pred_check
      _
    $region3: #{tpu_custom_call.1} parent=1 // pred_check_branch
      %9 = sbr.rel (0) target = $region5
    $region4: #{tpu_custom_call.1} parent=1 // pred_region
      %s11 = ssub.s32 32, 32
      %12 = vsyncadd [#allocation3], %s11
      %s14 = sshll.u32 [#allocation2], 4
      %s15 = int_to_ptr.vmem [resolvable:$true] %s14
      %17 = dma.hbm_to_vmem [thread:$0]  %s0, 32, %s15, [#allocation3]
    $region5: #{tpu_custom_call.1} parent=1 // pred_fallthru
      _
    // Predicated region
    $region6: #{tpu_custom_call.1} parent=1 // pred_check
      _
    $region7: #{tpu_custom_call.1} parent=1 // pred_check_branch
      %19 = sbr.rel (0) target = $region9
    $region8: #{tpu_custom_call.1} parent=1 // pred_region
      %20 = dma.done [#allocation3], 32
    $region9: #{tpu_custom_call.1} parent=1 // pred_fallthru
      _
    %v21 = vld [vmem:[#allocation2] sm:$0x3]
    %v22 = vmul.f32 %v21, %v21
    %vm23 = vcmask 1041408
    %v24 = vsel %vm23, %v22, 0.0
    %25 = vadd.xlane.f32.xlu0 %v24
    %v26 = vpop.xlane.xlu0 %25
    %v27 = vrot.slane %v26, 4
    %v28 = vadd.f32 %v26, %v27
    %v29 = vrot.slane %v28, 2
    %v30 = vadd.f32 %v28, %v29
    %v31 = vrot.slane %v30, 1
    %v32 = vadd.f32 %v30, %v31
    %s33 = vtos %v32
    %s34 = smul.f32 %s33, 0.0625
    %v35 = vstv %s34
    %v36 = vrsqrt.pop %v35
    %s37 = vtos %v36
    %v38 = vstv %s37
    %v39 = vmul.f32 %v21, %v38
    %40 = vst [vmem:[#allocation5] sm:$0x3] %v39
    // Predicated region
    $region10: #{tpu_custom_call.1} parent=1 // pred_check
      _
    $region11: #{tpu_custom_call.1} parent=1 // pred_check_branch
      %42 = sbr.rel (0) target = $region13
    $region12: #{tpu_custom_call.1} parent=1 // pred_region
      %s44 = ssub.s32 32, 32
      %45 = vsyncadd [#allocation4], %s44
      %s47 = sshll.u32 [#allocation5], 4
      %s48 = int_to_ptr.vmem [resolvable:$true] %s47
      %50 = dma.vmem_to_hbm [thread:$0]  %s48, 32, %s1, [#allocation4]
    $region13: #{tpu_custom_call.1} parent=1 // pred_fallthru
      _
    // Predicated region
    $region14: #{tpu_custom_call.1} parent=1 // pred_check
      _
    $region15: #{tpu_custom_call.1} parent=1 // pred_check_branch
      %52 = sbr.rel (0) target = $region17
    $region16: #{tpu_custom_call.1} parent=1 // pred_region
      %53 = dma.done [#allocation4], 32
    $region17: #{tpu_custom_call.1} parent=1 // pred_fallthru
      _
    %54 = vsyncpa [#allocation3], 1
    %55 = vsyncpa [#allocation4], 1

</llo_original>
